<compile_context>
chip_gen: v6e
topology: v6e:2x2x1
jax: 0.10.0
libtpu: 0.0.40
codegen_flags: <defaults>
</compile_context>

<pallas_src>
import math

import jax
import jax.numpy as jnp
from jax.experimental import pallas as pl
from jax.experimental.pallas import tpu as pltpu


def _round_up(x, m):
    return ((x + m - 1) // m) * m


def _tpu_vmem_capacity_bytes():
    """Physical VMEM per TensorCore; conservative (v7x) fallback on failure."""
    try:
        return int(pltpu.get_tpu_info().vmem_capacity_bytes)
    except Exception:  # off-TPU tracing / older runtimes
        return 64 * 1024 * 1024


def _random_layer_kernel(num_inputs):
    """Kernel over (x0, W0, x1, W1, ..., out) VMEM refs.

    The 1/output_dim**(1/n) scale is already folded into W_0 (done once at
    construction), so the body is pure MXU matmuls + elementwise products with
    f32 accumulation.
    """

    def kernel(*refs):
        out_ref = refs[-1]
        in_refs = refs[:-1]
        acc = jnp.dot(in_refs[0][...], in_refs[1][...],
                      preferred_element_type=jnp.float32)
        for i in range(1, num_inputs):
            acc = acc * jnp.dot(in_refs[2 * i][...], in_refs[2 * i + 1][...],
                                preferred_element_type=jnp.float32)
        out_ref[...] = acc.astype(out_ref.dtype)

    return kernel


def _choose_tiles(batch, input_dims, output_dim, in_itemsize, out_itemsize,
                  vmem_budget, dual_core):
    """Pick the largest (tile_b, tile_n) output block that fits the budget.

    The VMEM model counts double-buffered I/O blocks, the in-kernel f32
    intermediates (accumulator + current dot result) and a fixed headroom for
    Mosaic internal scratch.  On dual-core parts (v7x) a non-trivial problem
    is never left as a single (1,1) grid block.
    """

    def vmem_bytes(tb, tn):
        b = 2 * tb * tn * out_itemsize                  # output block (x2 buffers)
        for d in input_dims:
            b += 2 * tb * d * in_itemsize               # x_i block (x2 buffers)
            b += 2 * d * tn * in_itemsize               # W_i block (x2 buffers)
        b += 2 * tb * tn * 4                            # f32 acc + current dot result
        b += 1 * 1024 * 1024                            # Mosaic internal scratch headroom
        return b

    tb_candidates = [t for t in (batch, 1024, 512, 256, 128, 64, 32, 16, 8)
                     if t <= batch and batch % t == 0]
    # Largest first; 128 is a last-resort candidate (only picked when nothing
    # wider fits -- fine on v5e, avoided in practice on v6e/v7x).
    tn_candidates = [t for t in (output_dim, 4096, 2048, 1024, 512, 256, 128)
                     if t <= output_dim and output_dim % t == 0]
    tb_candidates = list(dict.fromkeys(tb_candidates))
    tn_candidates = list(dict.fromkeys(tn_candidates))

    best = None
    for tb in tb_candidates:
        for tn in tn_candidates:
            need = vmem_bytes(tb, tn)
            if need > vmem_budget:
                continue
            key = (tb * tn, tn)            # biggest block; tie-break lane-dense
            if best is None or key > best[0]:
                best = (key, tb, tn, need)

    if best is None:
        # Pathologically large D_i: smallest block, let the compiler cope.
        tb, tn = tb_candidates[-1], tn_candidates[-1]
        return tb, tn, vmem_bytes(tb, tn)
    _, tb, tn, need = best

    # v7x megacore: split a single-block grid so both TensorCores get work.
    # Prefer splitting batch (keeps the wide lane-dense N tile); fall back to
    # splitting N while keeping it a 256/128 multiple.
    nontrivial = batch * output_dim >= 512 * 512
    if dual_core and nontrivial and tb == batch and tn == output_dim:
        if tb >= 16 and (tb // 2) % 8 == 0:
            tb //= 2
        elif tn >= 512 and (tn // 2) % 256 == 0:
            tn //= 2
        elif tn >= 256 and (tn // 2) % 128 == 0:
            tn //= 2
        need = vmem_bytes(tb, tn)
    return tb, tn, need


def random_layer_pallas(input_list, random_matrices, *, out_dtype=jnp.float32):
    """out[b, :] = prod_i (x_i @ W_i)[b, :].

    The constant scale must already be folded into W_0 (see RandomLayerPallas).
    input_list:      list of [B, D_i] arrays (f32 or bf16)
    random_matrices: list of [D_i, output_dim] arrays (same dtype as inputs)
    """
    assert len(input_list) == len(random_matrices) and len(input_list) >= 1
    n = len(input_list)
    B = input_list[0].shape[0]
    output_dim = random_matrices[0].shape[1]
    for x, w in zip(input_list, random_matrices):
        assert x.shape[0] == B and x.shape[1] == w.shape[0]
        assert w.shape[1] == output_dim

    # Lane-dense padding: last output dim -> multiple of 128 (unmasked vst),
    # batch -> multiple of 8 (sublane).  Zero padding is exact (padded rows /
    # columns are zero or products involving zero) and is sliced off below.
    B_pad = _round_up(B, 8)
    N_pad = _round_up(output_dim, 128)
    xs = [x if x.shape[0] == B_pad else jnp.pad(x, ((0, B_pad - B), (0, 0)))
          for x in input_list]
    ws = [w if w.shape[1] == N_pad
          else jnp.pad(w, ((0, 0), (0, N_pad - output_dim)))
          for w in random_matrices]

    in_itemsize = jnp.dtype(xs[0].dtype).itemsize
    out_itemsize = jnp.dtype(out_dtype).itemsize
    input_dims = [x.shape[1] for x in xs]

    # Generation-aware budget: ~60% of physical VMEM for blocks; explicit
    # limit with headroom (<=96 MiB on 128 MiB v5e/v6e, <=48 MiB on v7x).
    vmem_cap = _tpu_vmem_capacity_bytes()
    dual_core = vmem_cap <= 64 * 1024 * 1024            # v7x heuristic: 2 TCs/chip
    vmem_budget = int(vmem_cap * 0.6)
    tile_b, tile_n, vmem_needed = _choose_tiles(
        B_pad, input_dims, N_pad, in_itemsize, out_itemsize,
        vmem_budget, dual_core)

    grid_b = B_pad // tile_b
    grid_n = N_pad // tile_n

    # Grid-axis order by aggregate re-fetch cost: the bigger operand family
    # indexes the OUTER axis so it stays resident across the inner loop and is
    # streamed from HBM only once (mem-bound regime on v6e/v7x).
    weight_bytes = sum(d * N_pad for d in input_dims) * in_itemsize
    act_bytes = sum(B_pad * d for d in input_dims) * in_itemsize
    n_outer = weight_bytes > act_bytes

    if n_outer:
        grid = (grid_n, grid_b)
        x_map = lambda j, b: (b, 0)
        w_map = lambda j, b: (0, j)
        o_map = lambda j, b: (b, j)
    else:
        grid = (grid_b, grid_n)
        x_map = lambda b, j: (b, 0)
        w_map = lambda b, j: (0, j)
        o_map = lambda b, j: (b, j)

    operands, in_specs = [], []
    for x, w in zip(xs, ws):
        d = x.shape[1]
        in_specs.append(pl.BlockSpec((tile_b, d), x_map))   # x_i: batch-tiled
        in_specs.append(pl.BlockSpec((d, tile_n), w_map))   # W_i: N-tiled
        operands.extend([x, w])
    out_spec = pl.BlockSpec((tile_b, tile_n), o_map)

    vmem_limit = int(min(min(96 * 1024 * 1024, max(vmem_cap - 16 * 1024 * 1024,
                                                   32 * 1024 * 1024)),
                         max(vmem_needed + vmem_needed // 4,
                             16 * 1024 * 1024)))

    out_padded = pl.pallas_call(
        _random_layer_kernel(n),
        out_shape=jax.ShapeDtypeStruct((B_pad, N_pad), out_dtype),
        grid_spec=pltpu.PrefetchScalarGridSpec(
            num_scalar_prefetch=0,
            grid=grid,
            in_specs=in_specs,
            out_specs=out_spec,
        ),
        compiler_params=pltpu.CompilerParams(
            dimension_semantics=("parallel", "parallel"),
            vmem_limit_bytes=vmem_limit,
        ),
    )(*operands)

    if B_pad != B or N_pad != output_dim:
        out_padded = out_padded[:B, :output_dim]
    return out_padded


class RandomLayerPallas:
    """JAX/Pallas port of the PyTorch RandomLayer module.

    Note: compute defaults to bf16 operands with f32 MXU accumulation (the
    PyTorch module is f32 throughout); pass compute_dtype=jnp.float32 for a
    bit-faithful precision path.  out_dtype=jnp.bfloat16 is offered for
    downstreams that tolerate it (halves the output HBM write).
    """

    def __init__(self, input_dim_list, output_dim=256, *, key,
                 compute_dtype=jnp.bfloat16, out_dtype=jnp.float32):
        self.input_num = len(input_dim_list)
        self.output_dim = output_dim
        self.compute_dtype = compute_dtype
        self.out_dtype = out_dtype
        keys = jax.random.split(key, self.input_num)
        # torch.randn(input_dim, output_dim) equivalents (kept in f32 for ref).
        self.random_matrix = [
            jax.random.normal(keys[i], (input_dim_list[i], output_dim),
                              jnp.float32)
            for i in range(self.input_num)
        ]
        # Fold the fixed 1/output_dim**(1/n) scale into W_0 once at init
        # (weights are constants -> genuinely free, unlike per-call prescale),
        # cast to compute dtype and pre-pad the output dim to a 128 multiple
        # so no per-call weight copy is paid.
        scale = 1.0 / math.pow(float(output_dim), 1.0 / self.input_num)
        n_pad = _round_up(output_dim, 128)
        folded = list(self.random_matrix)
        folded[0] = folded[0] * scale
        self._kernel_matrices = []
        for m in folded:
            m = m.astype(compute_dtype)
            if n_pad != output_dim:
                m = jnp.pad(m, ((0, 0), (0, n_pad - output_dim)))
            self._kernel_matrices.append(m)
        # TODO(synk): v7x fp8 (or v6e int8) weight quantization of the fixed
        # Gaussian projections would halve weight HBM traffic again; omitted
        # here pending an accuracy study against the f32 reference.
        # TODO(synk): .cuda() in the torch module is device placement only; no
        # Pallas equivalent needed (arrays already live on the TPU backend).

    def __call__(self, input_list):
        xs = [x.astype(self.compute_dtype) for x in input_list]
        out = random_layer_pallas(xs, self._kernel_matrices,
                                  out_dtype=self.out_dtype)
        if out.shape[1] != self.output_dim:
            out = out[:, :self.output_dim]
        return out


def random_layer_reference(input_list, random_matrices, output_dim):
    """Pure-JAX f32 reference mirroring the PyTorch forward exactly."""
    n = len(input_list)
    prods = [x @ w for x, w in zip(input_list, random_matrices)]
    out = prods[0] / math.pow(float(output_dim), 1.0 / n)
    for p in prods[1:]:
        out = out * p
    return out


if __name__ == "__main__":
    key = jax.random.PRNGKey(0)

    # Shapes consistent with RandomLayer usage (e.g. CDAN: features + logits).
    batch = 8
    input_dim_list = [32, 16]
    output_dim = 256

    layer_key, data_key = jax.random.split(key)
    data_keys = jax.random.split(data_key, len(input_dim_list))
    input_list = [
        jax.random.normal(data_keys[i], (batch, input_dim_list[i]), jnp.float32)
        for i in range(len(input_dim_list))
    ]

    # --- f32 compute path: strict check against the torch-mirroring ref -----
    layer_f32 = RandomLayerPallas(input_dim_list, output_dim, key=layer_key,
                                  compute_dtype=jnp.float32)
    out_f32 = jax.block_until_ready(layer_f32(input_list))
    ref_f32 = random_layer_reference(input_list, layer_f32.random_matrix,
                                     output_dim)
    assert out_f32.shape == (batch, output_dim)
    assert jnp.allclose(out_f32, ref_f32, atol=1e-4, rtol=1e-4), \
        "f32 kernel mismatch vs reference"

    # --- bf16 compute path (default): check vs bf16-operand reference -------
    layer_bf16 = RandomLayerPallas(input_dim_list, output_dim, key=layer_key,
                                   compute_dtype=jnp.bfloat16)
    out_bf16 = jax.block_until_ready(layer_bf16(input_list))
    xs_bf16 = [x.astype(jnp.bfloat16) for x in input_list]
    prods = [jnp.dot(x, w, preferred_element_type=jnp.float32)
             for x, w in zip(xs_bf16, layer_bf16._kernel_matrices)]
    ref_bf16 = prods[0]
    for p in prods[1:]:
        ref_bf16 = ref_bf16 * p
    assert out_bf16.shape == (batch, output_dim)
    assert jnp.allclose(out_bf16, ref_bf16, atol=1e-2, rtol=1e-2), \
        "bf16 kernel mismatch vs bf16-operand reference"

    # --- unaligned shapes: exercise the pad-to-(8,128)-and-slice path -------
    odd_batch, odd_dims, odd_out = 6, [24, 10], 192
    odd_key, odd_data_key = jax.random.split(jax.random.PRNGKey(1))
    odd_data_keys = jax.random.split(odd_data_key, len(odd_dims))
    odd_inputs = [
        jax.random.normal(odd_data_keys[i], (odd_batch, odd_dims[i]),
                          jnp.float32)
        for i in range(len(odd_dims))
    ]
    layer_odd = RandomLayerPallas(odd_dims, odd_out, key=odd_key,
                                  compute_dtype=jnp.float32)
    out_odd = jax.block_until_ready(layer_odd(odd_inputs))
    ref_odd = random_layer_reference(odd_inputs, layer_odd.random_matrix,
                                     odd_out)
    assert out_odd.shape == (odd_batch, odd_out)
    assert jnp.allclose(out_odd, ref_odd, atol=1e-4, rtol=1e-4), \
        "padded-shape kernel mismatch vs reference"

    print("KERNEL_OK")
</pallas_src>

<mosaic_0001>
module attributes {stable_mosaic.version = 11 : i64} {
  func.func @kernel(%arg0: i32, %arg1: i32, %arg2: memref<8x32xf32, #tpu.memory_space<vmem>>, %arg3: memref<32x256xf32, #tpu.memory_space<vmem>>, %arg4: memref<8x16xf32, #tpu.memory_space<vmem>>, %arg5: memref<16x256xf32, #tpu.memory_space<vmem>>, %arg6: memref<8x256xf32, #tpu.memory_space<vmem>>) attributes {dimension_semantics = [#tpu.dimension_semantics<parallel>, #tpu.dimension_semantics<parallel>], iteration_bounds = array<i64: 1, 1>, scalar_prefetch = 0 : i64, scratch_operands = 0 : i64, tpu.core_type = #tpu.core_type<tc>, window_params = [{transform_indices = @transform_0, window_bounds = array<i64: 8, 32>}, {transform_indices = @transform_1, window_bounds = array<i64: 32, 256>}, {transform_indices = @transform_2, window_bounds = array<i64: 8, 16>}, {transform_indices = @transform_3, window_bounds = array<i64: 16, 256>}, {transform_indices = @transform_4, window_bounds = array<i64: 8, 256>}]} {
    %c0 = arith.constant 0 : index
    %c0_0 = arith.constant 0 : index
    %0 = vector.load %arg2[%c0, %c0_0] : memref<8x32xf32, #tpu.memory_space<vmem>>, vector<8x32xf32>
    %c0_1 = arith.constant 0 : index
    %c0_2 = arith.constant 0 : index
    %1 = vector.load %arg3[%c0_1, %c0_2] : memref<32x256xf32, #tpu.memory_space<vmem>>, vector<32x256xf32>
    %cst = arith.constant dense<0.000000e+00> : vector<8x256xf32>
    %2 = tpu.matmul %0, %1, %cst {dimension_numbers = #tpu.dot_dimension_numbers<[1], [0], [0], [1], [0, 0, 1, 1], [], []>} : vector<8x32xf32>, vector<32x256xf32>, vector<8x256xf32> -> vector<8x256xf32>
    %c0_3 = arith.constant 0 : index
    %c0_4 = arith.constant 0 : index
    %3 = vector.load %arg4[%c0_3, %c0_4] : memref<8x16xf32, #tpu.memory_space<vmem>>, vector<8x16xf32>
    %c0_5 = arith.constant 0 : index
    %c0_6 = arith.constant 0 : index
    %4 = vector.load %arg5[%c0_5, %c0_6] : memref<16x256xf32, #tpu.memory_space<vmem>>, vector<16x256xf32>
    %cst_7 = arith.constant dense<0.000000e+00> : vector<8x256xf32>
    %5 = tpu.matmul %3, %4, %cst_7 {dimension_numbers = #tpu.dot_dimension_numbers<[1], [0], [0], [1], [0, 0, 1, 1], [], []>} : vector<8x16xf32>, vector<16x256xf32>, vector<8x256xf32> -> vector<8x256xf32>
    %6 = arith.mulf %2, %5 : vector<8x256xf32>
    %c0_8 = arith.constant 0 : index
    %c0_9 = arith.constant 0 : index
    %7 = vector.load %arg6[%c0_8, %c0_9] : memref<8x256xf32, #tpu.memory_space<vmem>>, vector<8x256xf32>
    tpu.vector_store %arg6[%c0_8, %c0_9], %6 {strides = array<i32>} : memref<8x256xf32, #tpu.memory_space<vmem>>, vector<8x256xf32>,
    return
  }
  func.func @transform_0(%arg0: i32, %arg1: i32) -> (i32, i32) {
    %c0_i32 = arith.constant 0 : i32
    %c0_i32_0 = arith.constant 0 : i32
    return %arg1, %c0_i32 : i32, i32
  }
  func.func @transform_1(%arg0: i32, %arg1: i32) -> (i32, i32) {
    %c0_i32 = arith.constant 0 : i32
    %c0_i32_0 = arith.constant 0 : i32
    return %c0_i32, %arg0 : i32, i32
  }
  func.func @transform_2(%arg0: i32, %arg1: i32) -> (i32, i32) {
    %c0_i32 = arith.constant 0 : i32
    %c0_i32_0 = arith.constant 0 : i32
    return %arg1, %c0_i32 : i32, i32
  }
  func.func @transform_3(%arg0: i32, %arg1: i32) -> (i32, i32) {
    %c0_i32 = arith.constant 0 : i32
    %c0_i32_0 = arith.constant 0 : i32
    return %c0_i32, %arg0 : i32, i32
  }
  func.func @transform_4(%arg0: i32, %arg1: i32) -> (i32, i32) {
    %c0_i32 = arith.constant 0 : i32
    return %arg1, %arg0 : i32, i32
  }
}

</mosaic_0001>

<llo_original>
// kernel: tpu_custom_call.1
$region0: #{tpu_custom_call.1}
  #allocation0 [shape = 'u32[]', space=smem, size = 0x4, offset = 0x4, fixed_abs, tag = 'smem constant byte address 0x4 - core index']
  #allocation1 [shape = 'u32[144,128]{1,0:T(1,128)}', space=vmem, size = 0x12000, scoped, tag = 'internal scratch']
  %s0 = inlined_call_operand.hbm [shape: f32[8,32], index: 0, kind: input, shape index: {}]
  %s1 = inlined_call_operand.hbm [shape: f32[32,256], index: 1, kind: input, shape index: {}]
  %s2 = inlined_call_operand.hbm [shape: f32[8,16], index: 2, kind: input, shape index: {}]
  %s3 = inlined_call_operand.hbm [shape: f32[16,256], index: 3, kind: input, shape index: {}]
  %s4 = inlined_call_operand.hbm [shape: f32[8,256], index: 4, kind: output, shape index: {}]
  %s5 = sld [smem:[#allocation0]]
  $region42: #{tpu_custom_call.1} parent=0
    _
  %s7 = ssub.s32 1, %s5
  %s8 = scalar_select 0, %s7, %s5
  $region1: #{tpu_custom_call.1} parent=0
    #allocation2 [shape = 'u8[4096]{0}', space=vmem, size = 0x1000, scoped, tag = 'input window, operand 0, single buffered']
    #allocation3 [shape = 's32[1]{0}', space=sflag, size = 0x4, scoped, tag = 'scoped memory for tpu_custom_call.1']
    #allocation4 [shape = 's32[1]{0}', space=sflag, size = 0x4, scoped, tag = 'scoped memory for tpu_custom_call.1']
    #allocation5 [shape = 'u8[32768]{0}', space=vmem, size = 0x8000, scoped, tag = 'input window, operand 1, single buffered']
    #allocation6 [shape = 's32[1]{0}', space=sflag, size = 0x4, scoped, tag = 'scoped memory for tpu_custom_call.1']
    #allocation7 [shape = 'u8[4096]{0}', space=vmem, size = 0x1000, scoped, tag = 'input window, operand 2, single buffered']
    #allocation8 [shape = 'u8[16384]{0}', space=vmem, size = 0x4000, scoped, tag = 'input window, operand 3, single buffered']
    #allocation9 [shape = 's32[1]{0}', space=sflag, size = 0x4, scoped, tag = 'scoped memory for tpu_custom_call.1']
    #allocation10 [shape = 'u8[8192]{0}', space=vmem, size = 0x2000, scoped, tag = 'output window, operand 0, single buffered']
    %9 = vsyncpa [#allocation3], 0
    %10 = vsyncpa [#allocation6], 0
    %11 = vsyncpa [#allocation9], 0
    %12 = vsyncpa [#allocation4], 0
    // Predicated region
    $region2: #{tpu_custom_call.1} parent=1 // pred_check
      _
    $region3: #{tpu_custom_call.1} parent=1 // pred_check_branch
      %14 = sbr.rel (0) target = $region5
    $region4: #{tpu_custom_call.1} parent=1 // pred_region
      %s16 = ssub.s32 128, 128
      %17 = vsyncadd [#allocation3], %s16
      %s19 = sshll.u32 [#allocation2], 4
      %s20 = int_to_ptr.vmem [resolvable:$true] %s19
      %22 = dma.hbm_to_vmem [thread:$0]  %s0, 128, %s20, [#allocation3]
    $region5: #{tpu_custom_call.1} parent=1 // pred_fallthru
      _
    // Predicated region
    $region6: #{tpu_custom_call.1} parent=1 // pred_check
      _
    $region7: #{tpu_custom_call.1} parent=1 // pred_check_branch
      %24 = sbr.rel (0) target = $region9
    $region8: #{tpu_custom_call.1} parent=1 // pred_region
      %s26 = ssub.s32 1024, 1024
      %27 = vsyncadd [#allocation6], %s26
      %s28 = sshll.u32 [#allocation5], 4
      %s29 = int_to_ptr.vmem [resolvable:$true] %s28
      %34 = dma.hbm_to_vmem [thread:$0]  %s1, 1024, %s29, [#allocation6], 256, 256, 16
    $region9: #{tpu_custom_call.1} parent=1 // pred_fallthru
      _
    // Predicated region
    $region10: #{tpu_custom_call.1} parent=1 // pred_check
      _
    $region11: #{tpu_custom_call.1} parent=1 // pred_check_branch
      %36 = sbr.rel (0) target = $region13
    $region12: #{tpu_custom_call.1} parent=1 // pred_region
      %s38 = ssub.s32 128, 128
      %39 = vsyncadd [#allocation6], %s38
      %s41 = sshll.u32 [#allocation7], 4
      %s42 = int_to_ptr.vmem [resolvable:$true] %s41
      %44 = dma.hbm_to_vmem [thread:$0]  %s2, 128, %s42, [#allocation6]
    $region13: #{tpu_custom_call.1} parent=1 // pred_fallthru
      _
    // Predicated region
    $region14: #{tpu_custom_call.1} parent=1 // pred_check
      _
    $region15: #{tpu_custom_call.1} parent=1 // pred_check_branch
      %46 = sbr.rel (0) target = $region17
    $region16: #{tpu_custom_call.1} parent=1 // pred_region
      %s48 = ssub.s32 512, 512
      %49 = vsyncadd [#allocation9], %s48
      %s50 = sshll.u32 [#allocation8], 4
      %s51 = int_to_ptr.vmem [resolvable:$true] %s50
      %56 = dma.hbm_to_vmem [thread:$0]  %s3, 512, %s51, [#allocation9], 256, 256, 16
    $region17: #{tpu_custom_call.1} parent=1 // pred_fallthru
      _
    // Predicated region
    $region18: #{tpu_custom_call.1} parent=1 // pred_check
      _
    $region19: #{tpu_custom_call.1} parent=1 // pred_check_branch
      %58 = sbr.rel (0) target = $region21
    $region20: #{tpu_custom_call.1} parent=1 // pred_region
      %59 = dma.done [#allocation3], 128
    $region21: #{tpu_custom_call.1} parent=1 // pred_fallthru
      _
    // Predicated region
    $region22: #{tpu_custom_call.1} parent=1 // pred_check
      _
    $region23: #{tpu_custom_call.1} parent=1 // pred_check_branch
      %61 = sbr.rel (0) target = $region25
    $region24: #{tpu_custom_call.1} parent=1 // pred_region
      %62 = dma.done [#allocation6], 1024
    $region25: #{tpu_custom_call.1} parent=1 // pred_fallthru
      _
    // Predicated region
    $region26: #{tpu_custom_call.1} parent=1 // pred_check
      _
    $region27: #{tpu_custom_call.1} parent=1 // pred_check_branch
      %64 = sbr.rel (0) target = $region29
    $region28: #{tpu_custom_call.1} parent=1 // pred_region
      %65 = dma.done [#allocation6], 128
    $region29: #{tpu_custom_call.1} parent=1 // pred_fallthru
      _
    // Predicated region
    $region30: #{tpu_custom_call.1} parent=1 // pred_check
      _
    $region31: #{tpu_custom_call.1} parent=1 // pred_check_branch
      %67 = sbr.rel (0) target = $region33
    $region32: #{tpu_custom_call.1} parent=1 // pred_region
      %68 = dma.done [#allocation9], 512
    $region33: #{tpu_custom_call.1} parent=1 // pred_fallthru
      _
    %v69 = vld [vmem:[#allocation2] sm:$0xff]
    %v70 = vld [vmem:[#allocation5] sm:$0xff]
    %v71 = vld [vmem:[#allocation5 + $0x8] sm:$0xff]
    %v72 = vld [vmem:[#allocation5 + $0x10] sm:$0xff]
    %v73 = vld [vmem:[#allocation5 + $0x18] sm:$0xff]
    %v74 = vld [vmem:[#allocation5 + $0x20] sm:$0xff]
    %v75 = vld [vmem:[#allocation5 + $0x28] sm:$0xff]
    %v76 = vld [vmem:[#allocation5 + $0x30] sm:$0xff]
    %v77 = vld [vmem:[#allocation5 + $0x38] sm:$0xff]
    %vm78 = vcmask 261120
    %v80 = vsel %vm78, %v69, 0
    %82 = vmatprep.subr.mxu0 0.0
    %83 = vmatpush1.msra.mxu0 0.0
    %84 = vmatprep.subr.mxu0 0.0
    %85 = vmatpush1.msra.mxu0 0.0
    %86 = vmatprep.subr.mxu0 0.0
    %87 = vmatpush1.msra.mxu0 0.0
    %88 = vmatprep.subr.mxu0 0.0
    %89 = vmatpush1.msra.mxu0 0.0
    %90 = vmatprep.subr.mxu0 0.0
    %91 = vmatpush1.msra.mxu0 0.0
    %92 = vmatprep.subr.mxu0 0.0
    %93 = vmatpush1.msra.mxu0 0.0
    %94 = vmatprep.subr.mxu0 0.0
    %95 = vmatpush1.msra.mxu0 0.0
    %96 = vmatprep.subr.mxu0 0.0
    %97 = vmatpush1.msra.mxu0 0.0
    %98 = vmatprep.subr.mxu0 0.0
    %99 = vmatpush1.msra.mxu0 0.0
    %100 = vmatprep.subr.mxu0 0.0
    %101 = vmatpush1.msra.mxu0 0.0
    %102 = vmatprep.subr.mxu0 0.0
    %103 = vmatpush1.msra.mxu0 0.0
    %104 = vmatprep.subr.mxu0 0.0
    %105 = vmatpush1.msra.mxu0 0.0
    %106 = vmatprep.subr.mxu0 %v77
    %107 = vmatpush1.msra.mxu0 %v76
    %108 = vmatprep.subr.mxu0 %v75
    %109 = vmatpush1.msra.mxu0 %v74
    %110 = vmatprep.subr.mxu0 %v73
    %111 = vmatpush1.msra.mxu0 %v72
    %112 = vmatprep.subr.mxu0 %v71
    %113 = vmatpush1.msra.mxu0 %v70
    %114 = vmatprep.subr.mxu0 0.0
    %115 = vmatpush2.msra.mxu0 0.0
    %116 = vmatprep.subr.mxu0 0.0
    %117 = vmatpush2.msra.mxu0 0.0
    %118 = vmatprep.subr.mxu0 0.0
    %119 = vmatpush2.msra.mxu0 0.0
    %120 = vmatprep.subr.mxu0 0.0
    %121 = vmatpush2.msra.mxu0 0.0
    %122 = vmatprep.subr.mxu0 0.0
    %123 = vmatpush2.msra.mxu0 0.0
    %124 = vmatprep.subr.mxu0 0.0
    %125 = vmatpush2.msra.mxu0 0.0
    %126 = vmatprep.subr.mxu0 0.0
    %127 = vmatpush2.msra.mxu0 0.0
    %128 = vmatprep.subr.mxu0 0.0
    %129 = vmatpush2.msra.mxu0 0.0
    %130 = vmatprep.subr.mxu0 0.0
    %131 = vmatpush2.msra.mxu0 0.0
    %132 = vmatprep.subr.mxu0 0.0
    %133 = vmatpush2.msra.mxu0 0.0
    %134 = vmatprep.subr.mxu0 0.0
    %135 = vmatpush2.msra.mxu0 0.0
    %136 = vmatprep.subr.mxu0 0.0
    %137 = vmatpush2.msra.mxu0 0.0
    %138 = vmatprep.subr.mxu0 0.0
    %139 = vmatpush2.msra.mxu0 0.0
    %140 = vmatprep.subr.mxu0 0.0
    %141 = vmatpush2.msra.mxu0 0.0
    %142 = vmatprep.subr.mxu0 0.0
    %143 = vmatpush2.msra.mxu0 0.0
    %144 = vmatprep.subr.mxu0 0.0
    %145 = vmatpush2.msra.mxu0 0.0
    %146 = vmatprep.mubr.f32.mxu0 0.0
    %147 = vmatmul.mubr.f32.gmra.mxu0 %v80
    %v148 = vpop.f32.mrf.mxu0
    %v149 = vadd.f32 0.0, %v148
    %v150 = vpop.f32.mrf.mxu0
    %v151 = vadd.f32 0.0, %v150
    %152 = vdwg.mxu0
    %v153 = vld [vmem:[#allocation7] sm:$0xff]
    %v154 = vld [vmem:[#allocation8] sm:$0xff]
    %v155 = vld [vmem:[#allocation8 + $0x8] sm:$0xff]
    %v156 = vld [vmem:[#allocation8 + $0x10] sm:$0xff]
    %v157 = vld [vmem:[#allocation8 + $0x18] sm:$0xff]
    %vm158 = vcmask 130048
    %v160 = vsel %vm158, %v153, 0
    %162 = vmatprep.subr.mxu0 0.0
    %163 = vmatpush1.msra.mxu0 0.0
    %164 = vmatprep.subr.mxu0 0.0
    %165 = vmatpush1.msra.mxu0 0.0
    %166 = vmatprep.subr.mxu0 0.0
    %167 = vmatpush1.msra.mxu0 0.0
    %168 = vmatprep.subr.mxu0 0.0
    %169 = vmatpush1.msra.mxu0 0.0
    %170 = vmatprep.subr.mxu0 0.0
    %171 = vmatpush1.msra.mxu0 0.0
    %172 = vmatprep.subr.mxu0 0.0
    %173 = vmatpush1.msra.mxu0 0.0
    %174 = vmatprep.subr.mxu0 0.0
    %175 = vmatpush1.msra.mxu0 0.0
    %176 = vmatprep.subr.mxu0 0.0
    %177 = vmatpush1.msra.mxu0 0.0
    %178 = vmatprep.subr.mxu0 0.0
    %179 = vmatpush1.msra.mxu0 0.0
    %180 = vmatprep.subr.mxu0 0.0
    %181 = vmatpush1.msra.mxu0 0.0
    %182 = vmatprep.subr.mxu0 0.0
    %183 = vmatpush1.msra.mxu0 0.0
    %184 = vmatprep.subr.mxu0 0.0
    %185 = vmatpush1.msra.mxu0 0.0
    %186 = vmatprep.subr.mxu0 0.0
    %187 = vmatpush1.msra.mxu0 0.0
    %188 = vmatprep.subr.mxu0 0.0
    %189 = vmatpush1.msra.mxu0 0.0
    %190 = vmatprep.subr.mxu0 %v157
    %191 = vmatpush1.msra.mxu0 %v156
    %192 = vmatprep.subr.mxu0 %v155
    %193 = vmatpush1.msra.mxu0 %v154
    %194 = vmatprep.subr.mxu0 0.0
    %195 = vmatpush2.msra.mxu0 0.0
    %196 = vmatprep.subr.mxu0 0.0
    %197 = vmatpush2.msra.mxu0 0.0
    %198 = vmatprep.subr.mxu0 0.0
    %199 = vmatpush2.msra.mxu0 0.0
    %200 = vmatprep.subr.mxu0 0.0
    %201 = vmatpush2.msra.mxu0 0.0
    %202 = vmatprep.subr.mxu0 0.0
    %203 = vmatpush2.msra.mxu0 0.0
    %204 = vmatprep.subr.mxu0 0.0
    %205 = vmatpush2.msra.mxu0 0.0
    %206 = vmatprep.subr.mxu0 0.0
    %207 = vmatpush2.msra.mxu0 0.0
    %208 = vmatprep.subr.mxu0 0.0
    %209 = vmatpush2.msra.mxu0 0.0
    %210 = vmatprep.subr.mxu0 0.0
    %211 = vmatpush2.msra.mxu0 0.0
    %212 = vmatprep.subr.mxu0 0.0
    %213 = vmatpush2.msra.mxu0 0.0
    %214 = vmatprep.subr.mxu0 0.0
    %215 = vmatpush2.msra.mxu0 0.0
    %216 = vmatprep.subr.mxu0 0.0
    %217 = vmatpush2.msra.mxu0 0.0
    %218 = vmatprep.subr.mxu0 0.0
    %219 = vmatpush2.msra.mxu0 0.0
    %220 = vmatprep.subr.mxu0 0.0
    %221 = vmatpush2.msra.mxu0 0.0
    %222 = vmatprep.subr.mxu0 0.0
    %223 = vmatpush2.msra.mxu0 0.0
    %224 = vmatprep.subr.mxu0 0.0
    %225 = vmatpush2.msra.mxu0 0.0
    %226 = vmatprep.mubr.f32.mxu0 0.0
    %227 = vmatmul.mubr.f32.gmra.mxu0 %v160
    %v228 = vpop.f32.mrf.mxu0
    %v229 = vadd.f32 0.0, %v228
    %v230 = vpop.f32.mrf.mxu0
    %v231 = vadd.f32 0.0, %v230
    %232 = vdwg.mxu0
    %v233 = vmul.f32 %v149, %v229
    %v234 = vmul.f32 %v151, %v231
    %235 = vst [vmem:[#allocation10] sm:$0xff] %v233
    %236 = vst [vmem:[#allocation10 + $0x8] sm:$0xff] %v234
    // Predicated region
    $region34: #{tpu_custom_call.1} parent=1 // pred_check
      _
    $region35: #{tpu_custom_call.1} parent=1 // pred_check_branch
      %238 = sbr.rel (0) target = $region37
    $region36: #{tpu_custom_call.1} parent=1 // pred_region
      %s240 = ssub.s32 256, 256
      %241 = vsyncadd [#allocation4], %s240
      %s243 = sshll.u32 [#allocation10], 4
      %s244 = int_to_ptr.vmem [resolvable:$true] %s243
      %246 = dma.vmem_to_hbm [thread:$0]  %s244, 256, %s4, [#allocation4]
    $region37: #{tpu_custom_call.1} parent=1 // pred_fallthru
      _
    // Predicated region
    $region38: #{tpu_custom_call.1} parent=1 // pred_check
      _
    $region39: #{tpu_custom_call.1} parent=1 // pred_check_branch
      %248 = sbr.rel (0) target = $region41
    $region40: #{tpu_custom_call.1} parent=1 // pred_region
      %249 = dma.done [#allocation4], 256
    $region41: #{tpu_custom_call.1} parent=1 // pred_fallthru
      _
    %250 = vsyncpa [#allocation3], 1
    %251 = vsyncpa [#allocation6], 1
    %252 = vsyncpa [#allocation9], 1
    %253 = vsyncpa [#allocation4], 1

</llo_original>
